<compile_context>
chip_gen: v7x
topology: tpu7x:2x2x1
jax: 0.10.0
libtpu: 0.0.40
codegen_flags: <defaults>
</compile_context>

<pallas_src>
import functools

import jax
import jax.numpy as jnp
import numpy as np
from jax.experimental import pallas as pl
from jax.experimental.pallas import tpu as pltpu


def _conv_rnn_cell_kernel(cols_ref, w_ref, b_ref, o_ref, *, nonlinearity):
    """Grid = (B,). One fused lane-dense matmul per batch element.

    cols_ref : (1, T*(Cin+Chid), HW)  im2col'd [x ; h] columns, channels-first
    w_ref    : (Chid, T*(Cin+Chid))   [Wx | Wh] fused weights, VMEM-resident
    b_ref    : (Chid, 1)              combined bias (bx + bh)
    o_ref    : (1, Chid, HW)          HW (=256) on the lane axis -> unmasked vst
    """
    s = jnp.dot(w_ref[...], cols_ref[0], preferred_element_type=jnp.float32)
    s = s + b_ref[...]                      # (Chid, 1) broadcast over HW lanes
    if nonlinearity == "tanh":
        s = jnp.tanh(s)                     # EUP slot, hidden under MXU/VPU
    else:
        s = jnp.maximum(s, 0.0)
    o_ref[0] = s.astype(o_ref.dtype)


def conv2d_rnn_cell(x, hx, wx_oihw, wh_oihw, bx, bh, *, nonlinearity="tanh"):
    """x: (B, Cin, H, W), hx: (B, Chid, H, W) -> (B, Chid, H, W). NCHW I/O."""
    if nonlinearity not in ("tanh", "relu"):
        raise ValueError("Invalid nonlinearity selected for RNN.")
    B, Cin, H, W = x.shape
    Chid, _, KH, KW = wx_oihw.shape
    ph, pw = KH // 2, KW // 2
    T = KH * KW
    HW = H * W
    TC = T * (Cin + Chid)                     # fused contraction length

    # ---- glue (plain JAX): 'same' padding + channels-first im2col -----------
    # NCHW reshapes directly to (C, H*W): no activation transposes anywhere.
    xp = jnp.pad(x,  ((0, 0), (0, 0), (ph, ph), (pw, pw)))
    hp = jnp.pad(hx, ((0, 0), (0, 0), (ph, ph), (pw, pw)))
    x_slices = [xp[:, :, kh:kh + H, kw:kw + W].reshape(B, Cin, HW)
                for kh in range(KH) for kw in range(KW)]
    h_slices = [hp[:, :, kh:kh + H, kw:kw + W].reshape(B, Chid, HW)
                for kh in range(KH) for kw in range(KW)]
    # Single fused column matrix: rows = [x taps (tap-major, ch-minor) ; h taps]
    cols = jnp.concatenate(x_slices + h_slices, axis=1)      # (B, TC, HW)

    # OIHW -> (O, KH, KW, I) -> (Chid, T*In); column index = (kh*KW+kw)*In + c,
    # matching the concat order above.  Fuse [Wx | Wh] along the contraction.
    wx_mat = jnp.transpose(wx_oihw, (0, 2, 3, 1)).reshape(Chid, T * Cin)
    wh_mat = jnp.transpose(wh_oihw, (0, 2, 3, 1)).reshape(Chid, T * Chid)
    w_cat = jnp.concatenate([wx_mat, wh_mat], axis=1)         # (Chid, TC)
    b = (bx + bh).reshape(Chid, 1).astype(jnp.float32)

    # ---- Pallas hot path -----------------------------------------------------
    kernel = functools.partial(_conv_rnn_cell_kernel, nonlinearity=nonlinearity)
    flops = 2 * B * HW * Chid * TC
    transcendentals = B * HW * Chid if nonlinearity == "tanh" else 0
    bytes_accessed = 4 * (cols.size + w_cat.size + b.size + B * Chid * HW)

    out = pl.pallas_call(
        kernel,
        out_shape=jax.ShapeDtypeStruct((B, Chid, HW), x.dtype),
        grid_spec=pltpu.PrefetchScalarGridSpec(
            num_scalar_prefetch=0,
            grid=(B,),
            in_specs=[
                pl.BlockSpec((1, TC, HW), lambda b_: (b_, 0, 0)),
                # Weights / bias fully VMEM-resident across the whole grid.
                pl.BlockSpec((Chid, TC), lambda b_: (0, 0)),
                pl.BlockSpec((Chid, 1), lambda b_: (0, 0)),
            ],
            out_specs=pl.BlockSpec((1, Chid, HW), lambda b_: (b_, 0, 0)),
        ),
        compiler_params=pltpu.CompilerParams(
            dimension_semantics=("parallel",)),   # batch elems are independent
        cost_estimate=pl.CostEstimate(flops=flops,
                                      transcendentals=transcendentals,
                                      bytes_accessed=bytes_accessed),
    )(cols, w_cat, b)

    # (B, Chid, H*W) -> NCHW via a pure reshape (no transpose).
    return out.reshape(B, Chid, H, W)


def _reference_forward(x, hx, wx_oihw, wh_oihw, bx, bh, nonlinearity="tanh"):
    """Pure-JAX reference mirroring the PyTorch module."""
    dn = ("NCHW", "OIHW", "NCHW")
    KH, KW = wx_oihw.shape[2], wx_oihw.shape[3]
    pad = [(KH // 2, KH // 2), (KW // 2, KW // 2)]
    y = jax.lax.conv_general_dilated(x, wx_oihw, (1, 1), pad,
                                     dimension_numbers=dn)
    y = y + bx[None, :, None, None]
    z = jax.lax.conv_general_dilated(hx, wh_oihw, (1, 1), pad,
                                     dimension_numbers=dn)
    z = z + bh[None, :, None, None]
    hy = y + z
    return jnp.tanh(hy) if nonlinearity == "tanh" else jnp.maximum(hy, 0.0)


if __name__ == "__main__":
    # Module config: Conv2dRNNCell(input_size=4, hidden_size=32, kernel_size=3)
    B, Cin, Chid, H, W, K = 2, 4, 32, 16, 16, 3

    key = jax.random.PRNGKey(0)
    kx, kh, kwx, kwh, kbx, kbh = jax.random.split(key, 6)

    # reset_parameters(): uniform(-std, std), std = 1/sqrt(hidden_size)
    std = 1.0 / np.sqrt(Chid)
    wx_oihw = jax.random.uniform(kwx, (Chid, Cin, K, K), jnp.float32, -std, std)
    wh_oihw = jax.random.uniform(kwh, (Chid, Chid, K, K), jnp.float32, -std, std)
    bx = jax.random.uniform(kbx, (Chid,), jnp.float32, -std, std)
    bh = jax.random.uniform(kbh, (Chid,), jnp.float32, -std, std)

    x = jax.random.normal(kx, (B, Cin, H, W), jnp.float32)
    hx = jax.random.normal(kh, (B, Chid, H, W), jnp.float32)

    hy = conv2d_rnn_cell(x, hx, wx_oihw, wh_oihw, bx, bh, nonlinearity="tanh")
    hy = jax.block_until_ready(hy)

    hy_ref = _reference_forward(x, hx, wx_oihw, wh_oihw, bx, bh, "tanh")
    np.testing.assert_allclose(np.asarray(hy), np.asarray(hy_ref),
                               atol=1e-5, rtol=1e-5)

    # relu nonlinearity path
    hy_r = jax.block_until_ready(
        conv2d_rnn_cell(x, hx, wx_oihw, wh_oihw, bx, bh, nonlinearity="relu"))
    np.testing.assert_allclose(
        np.asarray(hy_r),
        np.asarray(_reference_forward(x, hx, wx_oihw, wh_oihw, bx, bh, "relu")),
        atol=1e-5, rtol=1e-5)

    # hx=None path of the module (hidden state defaults to zeros)
    hx0 = jnp.zeros((B, Chid, H, W), jnp.float32)
    hy0 = jax.block_until_ready(
        conv2d_rnn_cell(x, hx0, wx_oihw, wh_oihw, bx, bh, nonlinearity="tanh"))
    np.testing.assert_allclose(
        np.asarray(hy0),
        np.asarray(_reference_forward(x, hx0, wx_oihw, wh_oihw, bx, bh)),
        atol=1e-5, rtol=1e-5)

    print("KERNEL_OK")
</pallas_src>

<mosaic_0001>
module attributes {stable_mosaic.version = 11 : i64} {
  func.func @_conv_rnn_cell_kernel(%arg0: i32, %arg1: memref<1x324x256xf32, #tpu.memory_space<vmem>>, %arg2: memref<32x324xf32, #tpu.memory_space<vmem>>, %arg3: memref<32x1xf32, #tpu.memory_space<vmem>>, %arg4: memref<1x32x256xf32, #tpu.memory_space<vmem>>) attributes {dimension_semantics = [#tpu.dimension_semantics<parallel>], iteration_bounds = array<i64: 2>, scalar_prefetch = 0 : i64, scratch_operands = 0 : i64, tpu.core_type = #tpu.core_type<tc>, window_params = [{transform_indices = @transform_0, window_bounds = array<i64: 1, 324, 256>}, {pipeline_mode = #tpu.pipeline_mode<synchronous>, transform_indices = @transform_1, window_bounds = array<i64: 32, 324>}, {pipeline_mode = #tpu.pipeline_mode<synchronous>, transform_indices = @transform_2, window_bounds = array<i64: 32, 1>}, {transform_indices = @transform_3, window_bounds = array<i64: 1, 32, 256>}]} {
    %c0 = arith.constant 0 : index
    %c0_0 = arith.constant 0 : index
    %0 = vector.load %arg2[%c0, %c0_0] : memref<32x324xf32, #tpu.memory_space<vmem>>, vector<32x324xf32>
    %c0_1 = arith.constant 0 : index
    %c0_2 = arith.constant 0 : index
    %c0_3 = arith.constant 0 : index
    %1 = vector.load %arg1[%c0_1, %c0_2, %c0_3] : memref<1x324x256xf32, #tpu.memory_space<vmem>>, vector<1x324x256xf32>
    %2 = vector.shape_cast %1 : vector<1x324x256xf32> to vector<324x256xf32>
    %cst = arith.constant dense<0.000000e+00> : vector<32x256xf32>
    %3 = tpu.matmul %0, %2, %cst {dimension_numbers = #tpu.dot_dimension_numbers<[1], [0], [0], [1], [0, 0, 1, 1], [], []>} : vector<32x324xf32>, vector<324x256xf32>, vector<32x256xf32> -> vector<32x256xf32>
    %c0_4 = arith.constant 0 : index
    %c0_5 = arith.constant 0 : index
    %4 = vector.load %arg3[%c0_4, %c0_5] : memref<32x1xf32, #tpu.memory_space<vmem>>, vector<32x1xf32>
    %5 = vector.broadcast %4 : vector<32x1xf32> to vector<32x256xf32>
    %6 = arith.addf %3, %5 : vector<32x256xf32>
    %7 = math.tanh %6 : vector<32x256xf32>
    %c0_6 = arith.constant 0 : index
    %c0_7 = arith.constant 0 : index
    %c0_8 = arith.constant 0 : index
    %8 = vector.load %arg4[%c0_6, %c0_7, %c0_8] : memref<1x32x256xf32, #tpu.memory_space<vmem>>, vector<1x32x256xf32>
    %9 = vector.shape_cast %8 : vector<1x32x256xf32> to vector<32x256xf32>
    %10 = vector.shape_cast %7 : vector<32x256xf32> to vector<1x32x256xf32>
    tpu.vector_store %arg4[%c0_6, %c0_7, %c0_8], %10 {strides = array<i32>} : memref<1x32x256xf32, #tpu.memory_space<vmem>>, vector<1x32x256xf32>,
    return
  }
  func.func @transform_0(%arg0: i32) -> (i32, i32, i32) {
    %c0_i32 = arith.constant 0 : i32
    %c0_i32_0 = arith.constant 0 : i32
    %c0_i32_1 = arith.constant 0 : i32
    return %arg0, %c0_i32, %c0_i32_0 : i32, i32, i32
  }
  func.func @transform_1(%arg0: i32) -> (i32, i32) {
    %c0_i32 = arith.constant 0 : i32
    %c0_i32_0 = arith.constant 0 : i32
    %c0_i32_1 = arith.constant 0 : i32
    return %c0_i32, %c0_i32_0 : i32, i32
  }
  func.func @transform_2(%arg0: i32) -> (i32, i32) {
    %c0_i32 = arith.constant 0 : i32
    %c0_i32_0 = arith.constant 0 : i32
    %c0_i32_1 = arith.constant 0 : i32
    return %c0_i32, %c0_i32_0 : i32, i32
  }
  func.func @transform_3(%arg0: i32) -> (i32, i32, i32) {
    %c0_i32 = arith.constant 0 : i32
    %c0_i32_0 = arith.constant 0 : i32
    %c0_i32_1 = arith.constant 0 : i32
    return %arg0, %c0_i32, %c0_i32_0 : i32, i32, i32
  }
}

</mosaic_0001>

<llo_original>
// kernel: tpu_custom_call.1
$region0: #{tpu_custom_call.1}
  #allocation0 [shape = 'u32[]', space=smem, size = 0x4, offset = 0x4, fixed_abs, tag = 'smem constant byte address 0x4 - core index']
  #allocation1 [shape = 'u32[144,128]{1,0:T(1,128)}', space=vmem, size = 0x12000, scoped, tag = 'internal scratch']
  %s0 = inlined_call_operand.vmem [shape: f32[2,324,256], index: 0, kind: input, shape index: {}]
  %s1 = inlined_call_operand.vmem [shape: f32[32,324], index: 1, kind: input, shape index: {}]
  %s2 = inlined_call_operand.vmem [shape: f32[32,1], index: 2, kind: input, shape index: {}]
  %s3 = inlined_call_operand.hbm [shape: f32[2,32,256], index: 3, kind: output, shape index: {}]
  %s4 = sld [smem:[#allocation0]]
  $region45: #{tpu_custom_call.1} parent=0
    _
  %s6 = ssub.s32 1, %s4
  %s7 = scalar_select 0, %s6, %s4
  $region1: #{tpu_custom_call.1} parent=0
    #allocation2 [shape = 'u8[65536]{0}', space=vmem, size = 0x10000, scoped, tag = 'output window, operand 0']
    #allocation3 [shape = 's32[2]{0}', space=sflag, size = 0x8, scoped, tag = 'scoped memory for tpu_custom_call.1']
    %8 = vsyncpa [#allocation3], 0
    %s9 = scalar_lea.sflag [#allocation3], 1
    %10 = vsyncpa %s9, 0
    loop: start=0, step=1, limit=4
    $region2: #{tpu_custom_call.1} parent=1 // loop_pre_header
      _
    $region3: #{tpu_custom_call.1} parent=1 // loop_header
      %s12 = sphi 0, %s16
      %p13 = scmp.ge.s32.totalorder %s12, 4
      %s22 = sphi 0, %s24
      %s25 = sphi 0, %s22
      %s26 = sphi 0, %s25
      %s42 = sphi 0, %s26
      %s46 = sphi 0, %s46
      %s48 = sphi 0, %s46
      %s49 = sphi 0, %s48
      %s63 = sphi 0, %s49
      %s67 = sphi 0, %s67
      %s69 = sphi 0, %s67
      %s70 = sphi 0, %s69
      %s84 = sphi 0, %s70
      %s90 = sphi 0, %s92
      %s93 = sphi 0, %s90
      %s94 = sphi 0, %s93
      %s110 = sphi 0, %s94
    $region4: #{tpu_custom_call.1} parent=1 // loop_header_branch
      %15 = sbr.rel (%p13) target = $region8
    $region5: #{tpu_custom_call.1} parent=1 // loop_body
      %s17 = ssub.s32 %s12, 1
      %s18 = ssub.s32 %s12, 2
      %s19 = sadd.s32 %s12, 1
      %s20 = ssub.s32 %s12, %s19
      %p21 = scmp.eq.s32.totalorder %s20, 0
      %s23 = sadd.s32 %s22, 1
      %s24 = scalar_select %p21, %s22, %s23
      %p27 = pneg %p21
      %p28 = scmp.eq.s32.totalorder %s12, 1
      %p29 = por %p27, %p28
      %p30 = scmp.ne.s32.totalorder %s22, %s25
      %p31 = scmp.eq.s32.totalorder %s12, 0
      %p32 = por %p30, %p31
      %p33 = scmp.ne.s32.totalorder %s22, %s25
      %p34 = scmp.eq.s32.totalorder %s17, 1
      %p35 = por %p33, %p34
      %p36 = scmp.ne.s32.totalorder %s25, %s26
      %p37 = scmp.eq.s32.totalorder %s17, 0
      %p38 = por %p36, %p37
      %p39 = scmp.ne.s32.totalorder %s25, %s26
      %p40 = scmp.eq.s32.totalorder %s18, 1
      %p41 = por %p39, %p40
      %p43 = scmp.ne.s32.totalorder %s26, %s42
      %p44 = scmp.eq.s32.totalorder %s18, 0
      %p45 = por %p43, %p44
      %s47 = sadd.s32 %s46, 1
      %p50 = scmp.eq.s32.totalorder %s12, 1
      %p51 = scmp.ne.s32.totalorder %s46, %s48
      %p52 = scmp.eq.s32.totalorder %s12, 0
      %p53 = por %p51, %p52
      %p54 = scmp.ne.s32.totalorder %s46, %s48
      %p55 = scmp.eq.s32.totalorder %s17, 1
      %p56 = por %p54, %p55
      %p57 = scmp.ne.s32.totalorder %s48, %s49
      %p58 = scmp.eq.s32.totalorder %s17, 0
      %p59 = por %p57, %p58
      %p60 = scmp.ne.s32.totalorder %s48, %s49
      %p61 = scmp.eq.s32.totalorder %s18, 1
      %p62 = por %p60, %p61
      %p64 = scmp.ne.s32.totalorder %s49, %s63
      %p65 = scmp.eq.s32.totalorder %s18, 0
      %p66 = por %p64, %p65
      %s68 = sadd.s32 %s67, 1
      %p71 = scmp.eq.s32.totalorder %s12, 1
      %p72 = scmp.ne.s32.totalorder %s67, %s69
      %p73 = scmp.eq.s32.totalorder %s12, 0
      %p74 = por %p72, %p73
      %p75 = scmp.ne.s32.totalorder %s67, %s69
      %p76 = scmp.eq.s32.totalorder %s17, 1
      %p77 = por %p75, %p76
      %p78 = scmp.ne.s32.totalorder %s69, %s70
      %p79 = scmp.eq.s32.totalorder %s17, 0
      %p80 = por %p78, %p79
      %p81 = scmp.ne.s32.totalorder %s69, %s70
      %p82 = scmp.eq.s32.totalorder %s18, 1
      %p83 = por %p81, %p82
      %p85 = scmp.ne.s32.totalorder %s70, %s84
      %p86 = scmp.eq.s32.totalorder %s18, 0
      %p87 = por %p85, %p86
      %s88 = ssub.s32 %s12, %s19
      %p89 = scmp.eq.s32.totalorder %s88, 0
      %s91 = sadd.s32 %s90, 1
      %s92 = scalar_select %p89, %s90, %s91
      %p95 = pneg %p89
      %p96 = scmp.eq.s32.totalorder %s12, 1
      %p97 = por %p95, %p96
      %p98 = scmp.ne.s32.totalorder %s90, %s93
      %p99 = scmp.eq.s32.totalorder %s12, 0
      %p100 = por %p98, %p99
      %p101 = scmp.ne.s32.totalorder %s90, %s93
      %p102 = scmp.eq.s32.totalorder %s17, 1
      %p103 = por %p101, %p102
      %p104 = scmp.ne.s32.totalorder %s93, %s94
      %p105 = scmp.eq.s32.totalorder %s17, 0
      %p106 = por %p104, %p105
      %p107 = scmp.ne.s32.totalorder %s93, %s94
      %p108 = scmp.eq.s32.totalorder %s18, 1
      %p109 = por %p107, %p108
      %p111 = scmp.ne.s32.totalorder %s94, %s110
      %p112 = scmp.eq.s32.totalorder %s18, 0
      %p113 = por %p111, %p112
      %p114 = scmp.le.s32.totalorder 1, %s12
      %p115 = scmp.lt.s32.totalorder %s12, 3
      %p116 = pnand %p114, %p115
      %p117 = pneg %p116
      // Predicated region
      $region9: #{tpu_custom_call.1} parent=5 // pred_check
        _
      $region10: #{tpu_custom_call.1} parent=5 // pred_check_branch
        %119 = sbr.rel (%p116) target = $region12
      $region11: #{tpu_custom_call.1} parent=5 // pred_region
        %s120 = ssub.s32 %s12, 1
        // Predicated region
        $region13: #{tpu_custom_call.1} parent=11 // pred_check
          %p121 = pneg %p59
        $region14: #{tpu_custom_call.1} parent=11 // pred_check_branch
          %123 = sbr.rel (%p121) target = $region16
        $region15: #{tpu_custom_call.1} parent=11 // pred_region
          _
        $region16: #{tpu_custom_call.1} parent=11 // pred_fallthru
          _
        // Predicated region
        $region17: #{tpu_custom_call.1} parent=11 // pred_check
          %p124 = pneg %p80
        $region18: #{tpu_custom_call.1} parent=11 // pred_check_branch
          %126 = sbr.rel (%p124) target = $region20
        $region19: #{tpu_custom_call.1} parent=11 // pred_region
          _
        $region20: #{tpu_custom_call.1} parent=11 // pred_fallthru
          _
      $region12: #{tpu_custom_call.1} parent=5 // pred_fallthru
        _
      %p127 = scmp.lt.s32.totalorder %s12, 2
      // Predicated region
      $region21: #{tpu_custom_call.1} parent=5 // pred_check
        %p128 = pneg %p127
      $region22: #{tpu_custom_call.1} parent=5 // pred_check_branch
        %130 = sbr.rel (%p128) target = $region24
      $region23: #{tpu_custom_call.1} parent=5 // pred_region
        // Predicated region
        $region25: #{tpu_custom_call.1} parent=23 // pred_check
          %p131 = pneg %p32
        $region26: #{tpu_custom_call.1} parent=23 // pred_check_branch
          %133 = sbr.rel (%p131) target = $region28
        $region27: #{tpu_custom_call.1} parent=23 // pred_region
          %p134 = scmp.lt.s32.totalorder %s12, 1
          %s135 = scalar_select %p134, %s12, 1
          %s136 = smul.addr %s135, 82
          %s137 = smul.addr %s136, 8
          %s138 = scalar_lea.vmem %s0, %s137
        $region28: #{tpu_custom_call.1} parent=23 // pred_fallthru
          _
      $region24: #{tpu_custom_call.1} parent=5 // pred_fallthru
        _
      %p139 = scmp.le.s32.totalorder 1, %s12
      %p140 = scmp.lt.s32.totalorder %s12, 3
      %p141 = pnand %p139, %p140
      %p142 = pneg %p141
      // Predicated region
      $region29: #{tpu_custom_call.1} parent=5 // pred_check
        _
      $region30: #{tpu_custom_call.1} parent=5 // pred_check_branch
        %144 = sbr.rel (%p141) target = $region32
      $region31: #{tpu_custom_call.1} parent=5 // pred_region
        %s145 = ssub.s32 %s12, 1
        %p146 = scmp.lt.s32.totalorder %s17, 1
        %s147 = scalar_select %p146, %s17, 1
        %s148 = smul.addr %s147, 82
        %s149 = smul.addr %s148, 8
        %s150 = scalar_lea.vmem %s0, %s149
        %p151 = pneg %p38
        %p152 = pneg %p35
        %p153 = pneg %p59
        %p154 = pneg %p56
        %p155 = pneg %p80
        %p156 = pneg %p77
        %p157 = pneg %p106
        %p158 = pneg %p103
        %s159 = sand.u32 %s93, 1
        %s160 = scalar_lea.sflag [#allocation3], %s159
        %s161 = sand.u32 %s93, 1
        %s162 = smul.addr %s161, 64
        %s163 = scalar_lea.vmem [#allocation2], %s162
        %p164 = scmp.lt.s32.totalorder %s17, 1
        %s165 = scalar_select %p164, %s17, 1
        %s166 = smul.addr %s165, 82
        %s167 = smul.addr %s166, 8
        %s168 = scalar_lea.vmem %s0, %s167
        %v169 = vld [vmem:[%s1] sm:$0xff]
        %v170 = vld [vmem:[%s1 + $0x8] sm:$0xff]
        %v171 = vld [vmem:[%s1 + $0x10] sm:$0xff]
        %v172 = vld [vmem:[%s1 + $0x18] sm:$0xff]
        %v173 = vld [vmem:[%s1 + $0x20] sm:$0xff]
        %v174 = vld [vmem:[%s1 + $0x28] sm:$0xff]
        %v175 = vld [vmem:[%s1 + $0x30] sm:$0xff]
        %v176 = vld [vmem:[%s1 + $0x38] sm:$0xff]
        %v177 = vld [vmem:[%s1 + $0x40] sm:$0xff]
        %v178 = vld [vmem:[%s1 + $0x48] sm:$0xff]
        %v179 = vld [vmem:[%s1 + $0x50] sm:$0xff]
        %v180 = vld [vmem:[%s1 + $0x58] sm:$0xff]
        %v181 = vld [vmem:[%s168] sm:$0xff]
        %v182 = vld [vmem:[%s168 + $0x8] sm:$0xff]
        %v183 = vld [vmem:[%s168 + $0x10] sm:$0xff]
        %v184 = vld [vmem:[%s168 + $0x18] sm:$0xff]
        %v185 = vld [vmem:[%s168 + $0x20] sm:$0xff]
        %v186 = vld [vmem:[%s168 + $0x28] sm:$0xff]
        %v187 = vld [vmem:[%s168 + $0x30] sm:$0xff]
        %v188 = vld [vmem:[%s168 + $0x38] sm:$0xff]
        %v189 = vld [vmem:[%s168 + $0x40] sm:$0xff]
        %v190 = vld [vmem:[%s168 + $0x48] sm:$0xff]
        %v191 = vld [vmem:[%s168 + $0x50] sm:$0xff]
        %v192 = vld [vmem:[%s168 + $0x58] sm:$0xff]
        %v193 = vld [vmem:[%s168 + $0x60] sm:$0xff]
        %v194 = vld [vmem:[%s168 + $0x68] sm:$0xff]
        %v195 = vld [vmem:[%s168 + $0x70] sm:$0xff]
        %v196 = vld [vmem:[%s168 + $0x78] sm:$0xff]
        %v197 = vld [vmem:[%s168 + $0x80] sm:$0xff]
        %v198 = vld [vmem:[%s168 + $0x88] sm:$0xff]
        %v199 = vld [vmem:[%s168 + $0x90] sm:$0xff]
        %v200 = vld [vmem:[%s168 + $0x98] sm:$0xff]
        %v201 = vld [vmem:[%s168 + $0xa0] sm:$0xff]
        %v202 = vld [vmem:[%s168 + $0xa8] sm:$0xff]
        %v203 = vld [vmem:[%s168 + $0xb0] sm:$0xff]
        %v204 = vld [vmem:[%s168 + $0xb8] sm:$0xff]
        %v205 = vld [vmem:[%s168 + $0xc0] sm:$0xff]
        %v206 = vld [vmem:[%s168 + $0xc8] sm:$0xff]
        %v207 = vld [vmem:[%s168 + $0xd0] sm:$0xff]
        %v208 = vld [vmem:[%s168 + $0xd8] sm:$0xff]
        %v209 = vld [vmem:[%s168 + $0xe0] sm:$0xff]
        %v210 = vld [vmem:[%s168 + $0xe8] sm:$0xff]
        %v211 = vld [vmem:[%s168 + $0xf0] sm:$0xff]
        %v212 = vld [vmem:[%s168 + $0xf8] sm:$0xff]
        %v213 = vld [vmem:[%s168 + $0x100] sm:$0xff]
        %v214 = vld [vmem:[%s168 + $0x108] sm:$0xff]
        %v215 = vld [vmem:[%s168 + $0x110] sm:$0xff]
        %v216 = vld [vmem:[%s168 + $0x118] sm:$0xff]
        %v217 = vld [vmem:[%s168 + $0x120] sm:$0xff]
        %v218 = vld [vmem:[%s168 + $0x128] sm:$0xff]
        %v219 = vld [vmem:[%s168 + $0x130] sm:$0xff]
        %v220 = vld [vmem:[%s168 + $0x138] sm:$0xff]
        %v221 = vld [vmem:[%s168 + $0x140] sm:$0xff]
        %v222 = vld [vmem:[%s168 + $0x148] sm:$0xff]
        %v223 = vld [vmem:[%s168 + $0x150] sm:$0xff]
        %v224 = vld [vmem:[%s168 + $0x158] sm:$0xff]
        %v225 = vld [vmem:[%s168 + $0x160] sm:$0xff]
        %v226 = vld [vmem:[%s168 + $0x168] sm:$0xff]
        %v227 = vld [vmem:[%s168 + $0x170] sm:$0xff]
        %v228 = vld [vmem:[%s168 + $0x178] sm:$0xff]
        %v229 = vld [vmem:[%s168 + $0x180] sm:$0xff]
        %v230 = vld [vmem:[%s168 + $0x188] sm:$0xff]
        %v231 = vld [vmem:[%s168 + $0x190] sm:$0xff]
        %v232 = vld [vmem:[%s168 + $0x198] sm:$0xff]
        %v233 = vld [vmem:[%s168 + $0x1a0] sm:$0xff]
        %v234 = vld [vmem:[%s168 + $0x1a8] sm:$0xff]
        %v235 = vld [vmem:[%s168 + $0x1b0] sm:$0xff]
        %v236 = vld [vmem:[%s168 + $0x1b8] sm:$0xff]
        %v237 = vld [vmem:[%s168 + $0x1c0] sm:$0xff]
        %v238 = vld [vmem:[%s168 + $0x1c8] sm:$0xff]
        %v239 = vld [vmem:[%s168 + $0x1d0] sm:$0xff]
        %v240 = vld [vmem:[%s168 + $0x1d8] sm:$0xff]
        %v241 = vld [vmem:[%s168 + $0x1e0] sm:$0xff]
        %v242 = vld [vmem:[%s168 + $0x1e8] sm:$0xff]
        %v243 = vld [vmem:[%s168 + $0x1f0] sm:$0xff]
        %v244 = vld [vmem:[%s168 + $0x1f8] sm:$0xff]
        %v245 = vld [vmem:[%s168 + $0x200] sm:$0xff]
        %v246 = vld [vmem:[%s168 + $0x208] sm:$0xff]
        %v247 = vld [vmem:[%s168 + $0x210] sm:$0xff]
        %v248 = vld [vmem:[%s168 + $0x218] sm:$0xff]
        %v249 = vld [vmem:[%s168 + $0x220] sm:$0xff]
        %v250 = vld [vmem:[%s168 + $0x228] sm:$0xff]
        %v251 = vld [vmem:[%s168 + $0x230] sm:$0xff]
        %v252 = vld [vmem:[%s168 + $0x238] sm:$0xff]
        %v253 = vld [vmem:[%s168 + $0x240] sm:$0xff]
        %v254 = vld [vmem:[%s168 + $0x248] sm:$0xff]
        %v255 = vld [vmem:[%s168 + $0x250] sm:$0xff]
        %v256 = vld [vmem:[%s168 + $0x258] sm:$0xff]
        %v257 = vld [vmem:[%s168 + $0x260] sm:$0xff]
        %v258 = vld [vmem:[%s168 + $0x268] sm:$0xff]
        %v259 = vld [vmem:[%s168 + $0x270] sm:$0xff]
        %v260 = vld [vmem:[%s168 + $0x278] sm:$0xff]
        %v261 = vld [vmem:[%s168 + $0x280] sm:$0xf]
        %v262 = vld [vmem:[%s168 + $0x288] sm:$0xf]
        %v263 = vld [vmem:[%s2] sm:$0xff]
        %v264 = vld [vmem:[%s2 + $0x8] sm:$0xff]
        %v265 = vld [vmem:[%s2 + $0x10] sm:$0xff]
        %v266 = vld [vmem:[%s2 + $0x18] sm:$0xff]
        %268 = vset.pattern.permute.xlu0 0
        %269 = vperm.xlu0 %268, %v263
        %v270 = vpop.permute.xlu0 %269
        %273 = vset.pattern.permute.xlu0 0
        %274 = vperm.xlu0 %273, %v264
        %v275 = vpop.permute.xlu0 %274
        %278 = vset.pattern.permute.xlu0 0
        %279 = vperm.xlu0 %278, %v265
        %v280 = vpop.permute.xlu0 %279
        %283 = vset.pattern.permute.xlu0 0
        %284 = vperm.xlu0 %283, %v266
        %v285 = vpop.permute.xlu0 %284
        %vm287 = vcmask 556032
        %v289 = vsel %vm287, %v171, 0
        %v292 = vsel %vm287, %v174, 0
        %v295 = vsel %vm287, %v177, 0
        %v298 = vsel %vm287, %v180, 0
        %vm300 = vcmask 1043456
        %v302 = vsel %vm300, %v261, 0
        %v305 = vsel %vm300, %v262, 0
        %307 = vmatprep.subr.mxu0 %v182
        %308 = vmatpush1.msra.mxu0 %v181
        %309 = vmatprep.subr.mxu0 %v184
        %310 = vmatpush1.msra.mxu0 %v183
        %311 = vmatprep.subr.mxu0 %v186
        %312 = vmatpush1.msra.mxu0 %v185
        %313 = vmatprep.subr.mxu0 %v188
        %314 = vmatpush1.msra.mxu0 %v187
        %315 = vmatprep.subr.mxu0 %v190
        %316 = vmatpush1.msra.mxu0 %v189
        %317 = vmatprep.subr.mxu0 %v192
        %318 = vmatpush1.msra.mxu0 %v191
        %319 = vmatprep.subr.mxu0 %v194
        %320 = vmatpush1.msra.mxu0 %v193
        %321 = vmatprep.subr.mxu0 %v196
        %322 = vmatpush1.msra.mxu0 %v195
        %323 = vmatprep.subr.mxu0 %v198
        %324 = vmatpush1.msra.mxu0 %v197
        %325 = vmatprep.subr.mxu0 %v200
        %326 = vmatpush1.msra.mxu0 %v199
        %327 = vmatprep.subr.mxu0 %v202
        %328 = vmatpush1.msra.mxu0 %v201
        %329 = vmatprep.subr.mxu0 %v204
        %330 = vmatpush1.msra.mxu0 %v203
        %331 = vmatprep.subr.mxu0 %v206
        %332 = vmatpush1.msra.mxu0 %v205
        %333 = vmatprep.subr.mxu0 %v208
        %334 = vmatpush1.msra.mxu0 %v207
        %335 = vmatprep.subr.mxu0 %v210
        %336 = vmatpush1.msra.mxu0 %v209
        %337 = vmatprep.subr.mxu0 %v212
        %338 = vmatpush1.msra.mxu0 %v211
        %339 = vmatprep.subr.mxu0 %v214
        %340 = vmatpush1.msra.mxu0 %v213
        %341 = vmatprep.subr.mxu0 %v216
        %342 = vmatpush1.msra.mxu0 %v215
        %343 = vmatprep.subr.mxu0 %v218
        %344 = vmatpush1.msra.mxu0 %v217
        %345 = vmatprep.subr.mxu0 %v220
        %346 = vmatpush1.msra.mxu0 %v219
        %347 = vmatprep.subr.mxu0 %v222
        %348 = vmatpush1.msra.mxu0 %v221
        %349 = vmatprep.subr.mxu0 %v224
        %350 = vmatpush1.msra.mxu0 %v223
        %351 = vmatprep.subr.mxu0 %v226
        %352 = vmatpush1.msra.mxu0 %v225
        %353 = vmatprep.subr.mxu0 %v228
        %354 = vmatpush1.msra.mxu0 %v227
        %355 = vmatprep.subr.mxu0 %v230
        %356 = vmatpush1.msra.mxu0 %v229
        %357 = vmatprep.subr.mxu0 %v232
        %358 = vmatpush1.msra.mxu0 %v231
        %359 = vmatprep.subr.mxu0 %v234
        %360 = vmatpush1.msra.mxu0 %v233
        %361 = vmatprep.subr.mxu0 %v236
        %362 = vmatpush1.msra.mxu0 %v235
        %363 = vmatprep.subr.mxu0 %v238
        %364 = vmatpush1.msra.mxu0 %v237
        %365 = vmatprep.subr.mxu0 %v240
        %366 = vmatpush1.msra.mxu0 %v239
        %367 = vmatprep.subr.mxu0 %v242
        %368 = vmatpush1.msra.mxu0 %v241
        %369 = vmatprep.subr.mxu0 %v244
        %370 = vmatpush1.msra.mxu0 %v243
        %371 = vmatprep.mubr.f32.mxu0 %v170
        %372 = vmatmul.mubr.f32.gmra.mrb[0].mxu0 %v169
        %v373 = vpop.f32.mrb[0].mxu0
        %v374 = vadd.f32 %v270, %v373
        %v375 = vpop.f32.mrb[0].mxu0
        %v376 = vadd.f32 %v270, %v375
        %377 = vmatprep.mubr.f32.mxu0 %v173
        %378 = vmatmul.mubr.f32.gmra.mrb[0].mxu0 %v172
        %v379 = vpop.f32.mrb[0].mxu0
        %v380 = vadd.f32 %v275, %v379
        %v381 = vpop.f32.mrb[0].mxu0
        %v382 = vadd.f32 %v275, %v381
        %383 = vmatprep.mubr.f32.mxu0 %v176
        %384 = vmatmul.mubr.f32.gmra.mrb[0].mxu0 %v175
        %v385 = vpop.f32.mrb[0].mxu0
        %v386 = vadd.f32 %v280, %v385
        %v387 = vpop.f32.mrb[0].mxu0
        %v388 = vadd.f32 %v280, %v387
        %389 = vmatprep.mubr.f32.mxu0 %v179
        %390 = vmatmul.mubr.f32.gmra.mrb[0].mxu0 %v178
        %v391 = vpop.f32.mrb[0].mxu0
        %v392 = vadd.f32 %v285, %v391
        %v393 = vpop.f32.mrb[0].mxu0
        %v394 = vadd.f32 %v285, %v393
        %395 = vdwg.mxu0
        %396 = vmatprep.subr.mxu0 %v246
        %397 = vmatpush1.msra.mxu0 %v245
        %398 = vmatprep.subr.mxu0 %v248
        %399 = vmatpush1.msra.mxu0 %v247
        %400 = vmatprep.subr.mxu0 %v250
        %401 = vmatpush1.msra.mxu0 %v249
        %402 = vmatprep.subr.mxu0 %v252
        %403 = vmatpush1.msra.mxu0 %v251
        %404 = vmatprep.subr.mxu0 %v254
        %405 = vmatpush1.msra.mxu0 %v253
        %406 = vmatprep.subr.mxu0 %v256
        %407 = vmatpush1.msra.mxu0 %v255
        %408 = vmatprep.subr.mxu0 %v258
        %409 = vmatpush1.msra.mxu0 %v257
        %410 = vmatprep.subr.mxu0 %v260
        %411 = vmatpush1.msra.mxu0 %v259
        %412 = vmatprep.subr.mxu0 %v305
        %413 = vmatpush1.msra.mxu0 %v302
        %414 = vmatprep.subr.mxu0 0.0
        %415 = vmatpush1.msra.mxu0 0.0
        %416 = vmatprep.subr.mxu0 0.0
        %417 = vmatpush1.msra.mxu0 0.0
        %418 = vmatprep.subr.mxu0 0.0
        %419 = vmatpush1.msra.mxu0 0.0
        %420 = vmatprep.subr.mxu0 0.0
        %421 = vmatpush1.msra.mxu0 0.0
        %422 = vmatprep.subr.mxu0 0.0
        %423 = vmatpush1.msra.mxu0 0.0
        %424 = vmatprep.subr.mxu0 0.0
        %425 = vmatpush1.msra.mxu0 0.0
        %426 = vmatprep.subr.mxu0 0.0
        %427 = vmatpush1.msra.mxu0 0.0
        %428 = vmatprep.subr.mxu0 0.0
        %429 = vmatpush1.msra.mxu0 0.0
        %430 = vmatprep.subr.mxu0 0.0
        %431 = vmatpush1.msra.mxu0 0.0
        %432 = vmatprep.subr.mxu0 0.0
        %433 = vmatpush1.msra.mxu0 0.0
        %434 = vmatprep.subr.mxu0 0.0
        %435 = vmatpush1.msra.mxu0 0.0
        %436 = vmatprep.subr.mxu0 0.0
        %437 = vmatpush1.msra.mxu0 0.0
        %438 = vmatprep.subr.mxu0 0.0
        %439 = vmatpush1.msra.mxu0 0.0
        %440 = vmatprep.subr.mxu0 0.0
        %441 = vmatpush1.msra.mxu0 0.0
        %442 = vmatprep.subr.mxu0 0.0
        %443 = vmatpush1.msra.mxu0 0.0
        %444 = vmatprep.subr.mxu0 0.0
        %445 = vmatpush1.msra.mxu0 0.0
        %446 = vmatprep.subr.mxu0 0.0
        %447 = vmatpush1.msra.mxu0 0.0
        %448 = vmatprep.subr.mxu0 0.0
        %449 = vmatpush1.msra.mxu0 0.0
        %450 = vmatprep.subr.mxu0 0.0
        %451 = vmatpush1.msra.mxu0 0.0
        %452 = vmatprep.subr.mxu0 0.0
        %453 = vmatpush1.msra.mxu0 0.0
        %454 = vmatprep.subr.mxu0 0.0
        %455 = vmatpush1.msra.mxu0 0.0
        %456 = vmatprep.subr.mxu0 0.0
        %457 = vmatpush1.msra.mxu0 0.0
        %458 = vmatprep.subr.mxu0 0.0
        %459 = vmatpush1.msra.mxu0 0.0
        %460 = vmatprep.mubr.f32.mxu0 0.0
        %461 = vmatmul.mubr.f32.gmra.mrb[0].mxu0 %v289
        %v462 = vpop.f32.mrb[0].mxu0
        %v463 = vadd.f32 %v374, %v462
        %v464 = vpop.f32.mrb[0].mxu0
        %v465 = vadd.f32 %v376, %v464
        %466 = vmatprep.mubr.f32.mxu0 0.0
        %467 = vmatmul.mubr.f32.gmra.mrb[0].mxu0 %v292
        %v468 = vpop.f32.mrb[0].mxu0
        %v469 = vadd.f32 %v380, %v468
        %v470 = vpop.f32.mrb[0].mxu0
        %v471 = vadd.f32 %v382, %v470
        %472 = vmatprep.mubr.f32.mxu0 0.0
        %473 = vmatmul.mubr.f32.gmra.mrb[0].mxu0 %v295
        %v474 = vpop.f32.mrb[0].mxu0
        %v475 = vadd.f32 %v386, %v474
        %v476 = vpop.f32.mrb[0].mxu0
        %v477 = vadd.f32 %v388, %v476
        %478 = vmatprep.mubr.f32.mxu0 0.0
        %479 = vmatmul.mubr.f32.gmra.mrb[0].mxu0 %v298
        %v480 = vpop.f32.mrb[0].mxu0
        %v481 = vadd.f32 %v392, %v480
        %v482 = vpop.f32.mrb[0].mxu0
        %v483 = vadd.f32 %v394, %v482
        %484 = vdwg.mxu0
        %v485 = vtanh.pop %v463
        %v486 = vtanh.pop %v465
        %v487 = vtanh.pop %v469
        %v488 = vtanh.pop %v471
        %v489 = vtanh.pop %v475
        %v490 = vtanh.pop %v477
        %v491 = vtanh.pop %v481
        %v492 = vtanh.pop %v483
        %493 = vst [vmem:[%s163] sm:$0xff] %v485
        %494 = vst [vmem:[%s163 + $0x8] sm:$0xff] %v486
        %495 = vst [vmem:[%s163 + $0x10] sm:$0xff] %v487
        %496 = vst [vmem:[%s163 + $0x18] sm:$0xff] %v488
        %497 = vst [vmem:[%s163 + $0x20] sm:$0xff] %v489
        %498 = vst [vmem:[%s163 + $0x28] sm:$0xff] %v490
        %499 = vst [vmem:[%s163 + $0x30] sm:$0xff] %v491
        %500 = vst [vmem:[%s163 + $0x38] sm:$0xff] %v492
        %s501 = sand.u32 %s93, 1
        %s502 = scalar_lea.sflag [#allocation3], %s501
        %s503 = sand.u32 %s93, 1
        %s504 = smul.addr %s503, 64
        %s505 = scalar_lea.vmem [#allocation2], %s504
        // Predicated region
        $region33: #{tpu_custom_call.1} parent=31 // pred_check
          %p506 = pneg %p103
        $region34: #{tpu_custom_call.1} parent=31 // pred_check_branch
          %508 = sbr.rel (%p506) target = $region36
        $region35: #{tpu_custom_call.1} parent=31 // pred_region
          %s510 = ssub.s32 1024, 1024
          %511 = vsyncadd %s502, %s510
          %s512 = smul.addr %s17, 8
          %s513 = smul.addr %s512, 128
          %s514 = scalar_lea.hbm %s3, %s513
          %s515 = sshll.u32 %s505, 4
          %s516 = int_to_ptr.vmem [resolvable:$true] %s515
          %521 = dma.vmem_to_hbm [thread:$0]  %s516, 1024, %s514, %s502, 256, 256, 16
        $region36: #{tpu_custom_call.1} parent=31 // pred_fallthru
          _
      $region32: #{tpu_custom_call.1} parent=5 // pred_fallthru
        _
      %p522 = scmp.le.s32.totalorder 2, %s12
      // Predicated region
      $region37: #{tpu_custom_call.1} parent=5 // pred_check
        %p523 = pneg %p522
      $region38: #{tpu_custom_call.1} parent=5 // pred_check_branch
        %525 = sbr.rel (%p523) target = $region40
      $region39: #{tpu_custom_call.1} parent=5 // pred_region
        %s526 = ssub.s32 %s12, 2
        // Predicated region
        $region41: #{tpu_custom_call.1} parent=39 // pred_check
          %p527 = pneg %p109
        $region42: #{tpu_custom_call.1} parent=39 // pred_check_branch
          %529 = sbr.rel (%p527) target = $region44
        $region43: #{tpu_custom_call.1} parent=39 // pred_region
          %s530 = sand.u32 %s94, 1
          %s531 = scalar_lea.sflag [#allocation3], %s530
          %s532 = sand.u32 %s94, 1
          %s533 = smul.addr %s532, 64
          %s534 = scalar_lea.vmem [#allocation2], %s533
          %535 = dma.done %s531, 1024
        $region44: #{tpu_custom_call.1} parent=39 // pred_fallthru
          _
      $region40: #{tpu_custom_call.1} parent=5 // pred_fallthru
        _
    $region6: #{tpu_custom_call.1} parent=1 // loop_footer
      %s16 = sadd.s32 1, %s12
    $region7: #{tpu_custom_call.1} parent=1 // loop_footer_branch
      %11 = sbr.rel target = $region3
    $region8: #{tpu_custom_call.1} parent=1 // loop_exit
      _
    %536 = vsyncpa [#allocation3], 1
    %s537 = scalar_lea.sflag [#allocation3], 1
    %538 = vsyncpa %s537, 1

</llo_original>
